<compile_context>
chip_gen: v6e
topology: v6e:2x2x1
jax: 0.10.0
libtpu: 0.0.40
codegen_flags: <defaults>
</compile_context>

<pallas_src>
import functools

import jax
import jax.numpy as jnp
from jax.experimental import pallas as pl
from jax.experimental.pallas import tpu as pltpu


# ---------------------------------------------------------------------------
# Kernels
# ---------------------------------------------------------------------------

def _planar_kernel_rowsum(z_ref, u_ref, w_ref, b_ref, zout_ref, ldj_ref):
    """Natural layout: rows = batch, lanes = features (Z on the lane axis).

    Per-batch scalars are feature-axis (lane) reductions.  Used when Z is a
    multiple of 128, or when the batch cannot be repacked zero-copy.
    """
    z = z_ref[...].astype(jnp.float32)
    u = u_ref[...].astype(jnp.float32)
    w = w_ref[...].astype(jnp.float32)
    b = b_ref[...].astype(jnp.float32)          # (tb, 1)

    uw = jnp.sum(w * u, axis=-1, keepdims=True)                       # (tb, 1)
    # softplus(x) = max(x, 0) + log1p(exp(-|x|))  (numerically stable)
    m_uw = jnp.maximum(uw, 0.0) + jnp.log1p(jnp.exp(-jnp.abs(uw))) - 1.0
    w_norm_sq = jnp.sum(w * w, axis=-1, keepdims=True)
    # Guard only affects padded rows of a partial final tile (and the
    # degenerate all-zero-w row, where the reference itself produces NaN).
    denom = jnp.where(w_norm_sq > 0.0, w_norm_sq, 1.0)
    scale = (m_uw - uw) / denom                 # one divide per batch element
    u_hat = u + scale * w

    wzb = jnp.sum(w * z, axis=-1, keepdims=True) + b
    h = jnp.tanh(wzb)

    zout_ref[...] = (z + u_hat * h).astype(zout_ref.dtype)

    # psi . u_hat = (1 - h^2) * (w . u_hat) and w . u_hat == m_uw exactly,
    # so the full (tb, Z) psi array and its reduction are eliminated.  Since
    # m_uw = softplus(uw) - 1 > -1, the reference's |.| is a no-op.
    inner = 1.0 + (1.0 - h * h) * m_uw
    ldj_ref[...] = jnp.log(inner).astype(ldj_ref.dtype)


def _planar_kernel_packed(z_ref, u_ref, w_ref, b_ref, zout_ref, ldj_ref, *,
                          z_size, group):
    """Packed lane-dense layout: each 128-lane row holds `group` = 128//Z
    consecutive batch elements of `z_size` features each (zero-copy reshape of
    the row-major (B, Z) arrays).  Per-batch reductions and the scalar
    broadcasts go through the otherwise-idle MXU via a constant 0/1
    segment-indicator matrix.
    """
    z = z_ref[...].astype(jnp.float32)          # (tr, 128)
    u = u_ref[...].astype(jnp.float32)
    w = w_ref[...].astype(jnp.float32)
    b = b_ref[...].astype(jnp.float32)          # (tr, group)

    # seg[l, j]   = 1 if lane l belongs to group j     (128, group)
    # seg_t[j, l] = 1 if lane l belongs to group j     (group, 128)
    lane = jax.lax.broadcasted_iota(jnp.int32, (128, group), 0) // z_size
    grp = jax.lax.broadcasted_iota(jnp.int32, (128, group), 1)
    seg = (lane == grp).astype(jnp.float32)
    lane_t = jax.lax.broadcasted_iota(jnp.int32, (group, 128), 1) // z_size
    grp_t = jax.lax.broadcasted_iota(jnp.int32, (group, 128), 0)
    seg_t = (lane_t == grp_t).astype(jnp.float32)

    def segsum(x):      # (tr, 128) -> (tr, group): per-batch feature sum
        return jnp.dot(x, seg, precision=jax.lax.Precision.HIGHEST,
                       preferred_element_type=jnp.float32)

    def bcast(s):       # (tr, group) -> (tr, 128): replicate scalar per group
        return jnp.dot(s, seg_t, precision=jax.lax.Precision.HIGHEST,
                       preferred_element_type=jnp.float32)

    uw = segsum(w * u)                                                # (tr, g)
    m_uw = jnp.maximum(uw, 0.0) + jnp.log1p(jnp.exp(-jnp.abs(uw))) - 1.0
    w_norm_sq = segsum(w * w)
    denom = jnp.where(w_norm_sq > 0.0, w_norm_sq, 1.0)
    scale = (m_uw - uw) / denom

    wzb = segsum(w * z) + b
    h = jnp.tanh(wzb)                                                 # (tr, g)

    u_hat = u + bcast(scale) * w
    zout_ref[...] = (z + u_hat * bcast(h)).astype(zout_ref.dtype)

    inner = 1.0 + (1.0 - h * h) * m_uw
    ldj_ref[...] = jnp.log(inner).astype(ldj_ref.dtype)


# ---------------------------------------------------------------------------
# Tiling / launch
# ---------------------------------------------------------------------------

def _vmem_tile_budget_bytes():
    """Streamed-tile-buffer budget with headroom on every TPU generation."""
    vmem_phys = 64 << 20                        # v7x has the smallest (64 MiB)
    try:
        info = pltpu.get_tpu_info()
        vmem_phys = int(getattr(info, "vmem_capacity_bytes", vmem_phys)) or vmem_phys
    except Exception:
        pass
    # ~24 MiB of tile buffers: inside v6e's 32 MiB scoped default, >= 8 MiB of
    # headroom under v7x's 64 MiB physical VMEM.  v5e's 16 MiB scoped default
    # is raised via vmem_limit_bytes at the pallas_call.
    return min(24 << 20, max(4 << 20, vmem_phys // 2 - (8 << 20)))


def _pick_rows_tile(n_rows, row_stream_bytes, *, align=8, budget, min_steps=4):
    """Largest row tile that (a) keeps the double-buffered streaming working
    set under `budget`, (b) still yields >= `min_steps` grid steps when the
    extent allows (pipelining + v7x megacore sharding of the parallel batch
    axis), and (c) is a multiple of `align` unless it covers the full extent.
    """
    max_rows = max(align, budget // max(row_stream_bytes, 1))
    target = pl.cdiv(n_rows, min_steps)
    tile = min(max_rows, max(target, align))
    if tile >= n_rows:
        return n_rows
    return max(align, (tile // align) * align)


def planar_v2_forward(zk, u, w, b):
    """
    zk: (B, Z) ; u: (B, Z, 1) ; w: (B, 1, Z) ; b: (B, 1, 1)
    returns (z': (B, Z), log_det_jacobian: (B,))
    Matches PlanarV2.forward from the PyTorch reference.
    """
    B, Z = zk.shape
    # Row-major-contiguous reshapes only -- zero-copy, no extra HBM passes.
    u2 = u.reshape(B, Z)
    w2 = w.reshape(B, Z)
    b2 = b.reshape(B, 1)

    in_itemsize = jnp.dtype(zk.dtype).itemsize
    out_itemsize = in_itemsize
    budget = _vmem_tile_budget_bytes()

    packable = (Z < 128) and (128 % Z == 0) and (B % (128 // Z) == 0)

    if packable:
        group = 128 // Z
        n_rows = B // group
        z_in = zk.reshape(n_rows, 128)          # zero-copy repack
        u_in = u2.reshape(n_rows, 128)
        w_in = w2.reshape(n_rows, 128)
        b_in = b2.reshape(n_rows, group)
        row_width, sc_width = 128, group
        kernel = functools.partial(_planar_kernel_packed, z_size=Z, group=group)
    else:
        n_rows = B
        z_in, u_in, w_in, b_in = zk, u2, w2, b2
        row_width, sc_width = Z, 1
        kernel = _planar_kernel_rowsum

    # 3 streamed inputs + 1 streamed output, each double-buffered by the
    # BlockSpec pipeline (b / ldj tiles are tiny and covered by the headroom).
    row_stream_bytes = row_width * (3 * in_itemsize + out_itemsize) * 2
    tr = _pick_rows_tile(n_rows, row_stream_bytes, budget=budget)

    vec_block = (tr, row_width)
    sc_block = (tr, sc_width)
    index_map = lambda i: (i, 0)

    z_out, ldj = pl.pallas_call(
        kernel,
        out_shape=(
            jax.ShapeDtypeStruct((n_rows, row_width), zk.dtype),
            jax.ShapeDtypeStruct((n_rows, sc_width), jnp.float32),
        ),
        grid=(pl.cdiv(n_rows, tr),),
        in_specs=[
            pl.BlockSpec(vec_block, index_map),   # z
            pl.BlockSpec(vec_block, index_map),   # u
            pl.BlockSpec(vec_block, index_map),   # w
            pl.BlockSpec(sc_block, index_map),    # b
        ],
        out_specs=(
            pl.BlockSpec(vec_block, index_map),   # z'
            pl.BlockSpec(sc_block, index_map),    # ldj
        ),
        compiler_params=pltpu.CompilerParams(
            dimension_semantics=("parallel",),        # v7x megacore sharding
            vmem_limit_bytes=int(budget + (8 << 20)),  # raise v5e's 16 MiB default
        ),
    )(z_in, u_in, w_in, b_in)

    # Zero-copy reshapes back to the reference output shapes.
    return z_out.reshape(B, Z), ldj.reshape(B)


# ---------------------------------------------------------------------------
# Pure-JAX reference (exact f32, no MXU) mirroring the PyTorch forward.
# ---------------------------------------------------------------------------

def _reference(zk, u, w, b):
    zk3 = zk[:, :, None]                                  # (B, Z, 1)
    wt = jnp.transpose(w, (0, 2, 1))                      # (B, Z, 1)
    uw = jnp.sum(wt * u, axis=1, keepdims=True)           # (B, 1, 1)
    m_uw = -1.0 + jax.nn.softplus(uw)
    w_norm_sq = jnp.sum(w ** 2, axis=2, keepdims=True)    # (B, 1, 1)
    u_hat = u + (m_uw - uw) * wt / w_norm_sq
    wzb = jnp.sum(wt * zk3, axis=1, keepdims=True) + b
    h = jnp.tanh(wzb)
    z = (zk3 + u_hat * h)[:, :, 0]
    psi_dot_uhat = jnp.sum(wt * (1.0 - h ** 2) * u_hat, axis=1)   # (B, 1)
    ldj = jnp.log(jnp.abs(1.0 + psi_dot_uhat))[:, 0]
    return z, ldj


if __name__ == "__main__":
    key = jax.random.PRNGKey(0)

    def run_case(B, Z, dtype, atol, rtol):
        ks = jax.random.split(jax.random.fold_in(key, B * 1000 + Z), 4)
        zk = jax.random.normal(ks[0], (B, Z), dtype=jnp.float32)
        u = jax.random.normal(ks[1], (B, Z, 1), dtype=jnp.float32)
        w = jax.random.normal(ks[2], (B, 1, Z), dtype=jnp.float32)
        b = jax.random.normal(ks[3], (B, 1, 1), dtype=jnp.float32)
        zk_d, u_d, w_d, b_d = (x.astype(dtype) for x in (zk, u, w, b))

        z_out, ldj_out = planar_v2_forward(zk_d, u_d, w_d, b_d)
        jax.block_until_ready((z_out, ldj_out))

        # Compare against the reference evaluated on the exact values the
        # kernel saw (important for the bf16 case).
        z_ref, ldj_ref = _reference(*(x.astype(jnp.float32)
                                      for x in (zk_d, u_d, w_d, b_d)))
        assert z_out.shape == (B, Z) and ldj_out.shape == (B,)
        assert jnp.allclose(z_out.astype(jnp.float32), z_ref,
                            atol=atol, rtol=rtol), ("z mismatch", B, Z, dtype)
        assert jnp.allclose(ldj_out, ldj_ref,
                            atol=atol, rtol=rtol), ("ldj mismatch", B, Z, dtype)

    run_case(2, 32, jnp.float32, 1e-5, 1e-5)     # tiny batch -> row-sum path
    run_case(32, 32, jnp.float32, 1e-5, 1e-5)    # packed lane-dense MXU path
    run_case(4, 128, jnp.float32, 1e-5, 1e-5)    # lane-aligned row-sum path
    run_case(32, 64, jnp.bfloat16, 5e-2, 5e-2)   # bf16 HBM traffic (v5e win)

    print("KERNEL_OK")
</pallas_src>

<mosaic_0001>
module attributes {stable_mosaic.version = 11 : i64} {
  func.func @_planar_kernel_rowsum(%arg0: i32, %arg1: memref<2x32xf32, #tpu.memory_space<vmem>>, %arg2: memref<2x32xf32, #tpu.memory_space<vmem>>, %arg3: memref<2x32xf32, #tpu.memory_space<vmem>>, %arg4: memref<2x1xf32, #tpu.memory_space<vmem>>, %arg5: memref<2x32xf32, #tpu.memory_space<vmem>>, %arg6: memref<2x1xf32, #tpu.memory_space<vmem>>) attributes {dimension_semantics = [#tpu.dimension_semantics<parallel>], iteration_bounds = array<i64: 1>, scalar_prefetch = 0 : i64, scratch_operands = 0 : i64, tpu.core_type = #tpu.core_type<tc>, window_params = [{transform_indices = @transform_0, window_bounds = array<i64: 2, 32>}, {transform_indices = @transform_1, window_bounds = array<i64: 2, 32>}, {transform_indices = @transform_2, window_bounds = array<i64: 2, 32>}, {transform_indices = @transform_3, window_bounds = array<i64: 2, 1>}, {transform_indices = @transform_4, window_bounds = array<i64: 2, 32>}, {transform_indices = @transform_5, window_bounds = array<i64: 2, 1>}]} {
    %c0 = arith.constant 0 : index
    %c0_0 = arith.constant 0 : index
    %0 = vector.load %arg1[%c0, %c0_0] : memref<2x32xf32, #tpu.memory_space<vmem>>, vector<2x32xf32>
    %c0_1 = arith.constant 0 : index
    %c0_2 = arith.constant 0 : index
    %1 = vector.load %arg2[%c0_1, %c0_2] : memref<2x32xf32, #tpu.memory_space<vmem>>, vector<2x32xf32>
    %c0_3 = arith.constant 0 : index
    %c0_4 = arith.constant 0 : index
    %2 = vector.load %arg3[%c0_3, %c0_4] : memref<2x32xf32, #tpu.memory_space<vmem>>, vector<2x32xf32>
    %c0_5 = arith.constant 0 : index
    %c0_6 = arith.constant 0 : index
    %3 = vector.load %arg4[%c0_5, %c0_6] : memref<2x1xf32, #tpu.memory_space<vmem>>, vector<2x1xf32>
    %4 = arith.mulf %2, %1 : vector<2x32xf32>
    %cst = arith.constant dense<0.000000e+00> : vector<2xf32>
    %5 = vector.multi_reduction <add>, %4, %cst [1] : vector<2x32xf32> to vector<2xf32>
    %6 = vector.shape_cast %5 : vector<2xf32> to vector<2x1xf32>
    %cst_7 = arith.constant 0.000000e+00 : f32
    %7 = vector.broadcast %cst_7 : f32 to vector<2x1xf32>
    %8 = arith.maximumf %6, %7 : vector<2x1xf32>
    %9 = math.absf %6 : vector<2x1xf32>
    %cst_8 = arith.constant 0.000000e+00 : f32
    %10 = vector.broadcast %cst_8 : f32 to vector<2x1xf32>
    %11 = arith.subf %10, %9 : vector<2x1xf32>
    %12 = math.exp %11 : vector<2x1xf32>
    %13 = math.log1p %12 : vector<2x1xf32>
    %14 = arith.addf %8, %13 : vector<2x1xf32>
    %cst_9 = arith.constant 1.000000e+00 : f32
    %15 = vector.broadcast %cst_9 : f32 to vector<2x1xf32>
    %16 = arith.subf %14, %15 : vector<2x1xf32>
    %17 = arith.mulf %2, %2 : vector<2x32xf32>
    %cst_10 = arith.constant dense<0.000000e+00> : vector<2xf32>
    %18 = vector.multi_reduction <add>, %17, %cst_10 [1] : vector<2x32xf32> to vector<2xf32>
    %19 = vector.shape_cast %18 : vector<2xf32> to vector<2x1xf32>
    %cst_11 = arith.constant 0.000000e+00 : f32
    %20 = vector.broadcast %cst_11 : f32 to vector<2x1xf32>
    %21 = arith.cmpf ogt, %19, %20 : vector<2x1xf32>
    %cst_12 = arith.constant 1.000000e+00 : f32
    %22 = vector.broadcast %cst_12 : f32 to vector<2x1xf32>
    %23 = arith.select %21, %19, %22 : vector<2x1xi1>, vector<2x1xf32>
    %24 = arith.subf %16, %6 : vector<2x1xf32>
    %25 = arith.divf %24, %23 : vector<2x1xf32>
    %26 = vector.broadcast %25 : vector<2x1xf32> to vector<2x32xf32>
    %27 = arith.mulf %26, %2 : vector<2x32xf32>
    %28 = arith.addf %1, %27 : vector<2x32xf32>
    %29 = arith.mulf %2, %0 : vector<2x32xf32>
    %cst_13 = arith.constant dense<0.000000e+00> : vector<2xf32>
    %30 = vector.multi_reduction <add>, %29, %cst_13 [1] : vector<2x32xf32> to vector<2xf32>
    %31 = vector.shape_cast %30 : vector<2xf32> to vector<2x1xf32>
    %32 = arith.addf %31, %3 : vector<2x1xf32>
    %33 = math.tanh %32 : vector<2x1xf32>
    %34 = vector.broadcast %33 : vector<2x1xf32> to vector<2x32xf32>
    %35 = arith.mulf %28, %34 : vector<2x32xf32>
    %36 = arith.addf %0, %35 : vector<2x32xf32>
    %c0_14 = arith.constant 0 : index
    %c0_15 = arith.constant 0 : index
    %37 = vector.load %arg5[%c0_14, %c0_15] : memref<2x32xf32, #tpu.memory_space<vmem>>, vector<2x32xf32>
    tpu.vector_store %arg5[%c0_14, %c0_15], %36 {strides = array<i32>} : memref<2x32xf32, #tpu.memory_space<vmem>>, vector<2x32xf32>,
    %38 = arith.mulf %33, %33 : vector<2x1xf32>
    %cst_16 = arith.constant 1.000000e+00 : f32
    %39 = vector.broadcast %cst_16 : f32 to vector<2x1xf32>
    %40 = arith.subf %39, %38 : vector<2x1xf32>
    %41 = arith.mulf %40, %16 : vector<2x1xf32>
    %cst_17 = arith.constant 1.000000e+00 : f32
    %42 = vector.broadcast %cst_17 : f32 to vector<2x1xf32>
    %43 = arith.addf %42, %41 : vector<2x1xf32>
    %44 = math.log %43 : vector<2x1xf32>
    %c0_18 = arith.constant 0 : index
    %c0_19 = arith.constant 0 : index
    %45 = vector.load %arg6[%c0_18, %c0_19] : memref<2x1xf32, #tpu.memory_space<vmem>>, vector<2x1xf32>
    tpu.vector_store %arg6[%c0_18, %c0_19], %44 {strides = array<i32>} : memref<2x1xf32, #tpu.memory_space<vmem>>, vector<2x1xf32>,
    return
  }
  func.func @transform_0(%arg0: i32) -> (i32, i32) {
    %c0_i32 = arith.constant 0 : i32
    %c0_i32_0 = arith.constant 0 : i32
    return %arg0, %c0_i32 : i32, i32
  }
  func.func @transform_1(%arg0: i32) -> (i32, i32) {
    %c0_i32 = arith.constant 0 : i32
    %c0_i32_0 = arith.constant 0 : i32
    return %arg0, %c0_i32 : i32, i32
  }
  func.func @transform_2(%arg0: i32) -> (i32, i32) {
    %c0_i32 = arith.constant 0 : i32
    %c0_i32_0 = arith.constant 0 : i32
    return %arg0, %c0_i32 : i32, i32
  }
  func.func @transform_3(%arg0: i32) -> (i32, i32) {
    %c0_i32 = arith.constant 0 : i32
    %c0_i32_0 = arith.constant 0 : i32
    return %arg0, %c0_i32 : i32, i32
  }
  func.func @transform_4(%arg0: i32) -> (i32, i32) {
    %c0_i32 = arith.constant 0 : i32
    %c0_i32_0 = arith.constant 0 : i32
    return %arg0, %c0_i32 : i32, i32
  }
  func.func @transform_5(%arg0: i32) -> (i32, i32) {
    %c0_i32 = arith.constant 0 : i32
    %c0_i32_0 = arith.constant 0 : i32
    return %arg0, %c0_i32 : i32, i32
  }
}

</mosaic_0001>

<llo_original>
// kernel: tpu_custom_call.1
$region0: #{tpu_custom_call.1}
  #allocation0 [shape = 'u32[]', space=smem, size = 0x4, offset = 0x4, fixed_abs, tag = 'smem constant byte address 0x4 - core index']
  #allocation1 [shape = 'u32[144,128]{1,0:T(1,128)}', space=vmem, size = 0x12000, scoped, tag = 'internal scratch']
  %s0 = inlined_call_operand.vmem [shape: f32[2,32], index: 0, kind: input, shape index: {}]
  %s1 = inlined_call_operand.vmem [shape: f32[2,32], index: 1, kind: input, shape index: {}]
  %s2 = inlined_call_operand.vmem [shape: f32[2,32], index: 2, kind: input, shape index: {}]
  %s3 = inlined_call_operand.vmem [shape: f32[2,1], index: 3, kind: input, shape index: {}]
  %s4 = inlined_call_operand.hbm [shape: f32[2,32], index: 4, kind: output, shape index: {0}]
  %s5 = inlined_call_operand.vmem [shape: f32[2,1], index: 5, kind: output, shape index: {1}]
  %6 = xla_tuple %s4, %s5
  %s7 = sld [smem:[#allocation0]]
  $region34: #{tpu_custom_call.1} parent=0
    _
  %s9 = ssub.s32 1, %s7
  %s10 = scalar_select 0, %s9, %s7
  $region1: #{tpu_custom_call.1} parent=0
    #allocation2 [shape = 'u8[1024]{0}', space=vmem, size = 0x400, scoped, tag = 'output window, operand 0, single buffered']
    #allocation3 [shape = 's32[1]{0}', space=sflag, size = 0x4, scoped, tag = 'scoped memory for tpu_custom_call.1']
    %11 = vsyncpa [#allocation3], 0
    // Predicated region
    $region2: #{tpu_custom_call.1} parent=1 // pred_check
      _
    $region3: #{tpu_custom_call.1} parent=1 // pred_check_branch
      %13 = sbr.rel (0) target = $region5
    $region4: #{tpu_custom_call.1} parent=1 // pred_region
      _
    $region5: #{tpu_custom_call.1} parent=1 // pred_fallthru
      _
    // Predicated region
    $region6: #{tpu_custom_call.1} parent=1 // pred_check
      _
    $region7: #{tpu_custom_call.1} parent=1 // pred_check_branch
      %15 = sbr.rel (0) target = $region9
    $region8: #{tpu_custom_call.1} parent=1 // pred_region
      _
    $region9: #{tpu_custom_call.1} parent=1 // pred_fallthru
      _
    // Predicated region
    $region10: #{tpu_custom_call.1} parent=1 // pred_check
      _
    $region11: #{tpu_custom_call.1} parent=1 // pred_check_branch
      %17 = sbr.rel (0) target = $region13
    $region12: #{tpu_custom_call.1} parent=1 // pred_region
      _
    $region13: #{tpu_custom_call.1} parent=1 // pred_fallthru
      _
    // Predicated region
    $region14: #{tpu_custom_call.1} parent=1 // pred_check
      _
    $region15: #{tpu_custom_call.1} parent=1 // pred_check_branch
      %19 = sbr.rel (0) target = $region17
    $region16: #{tpu_custom_call.1} parent=1 // pred_region
      _
    $region17: #{tpu_custom_call.1} parent=1 // pred_fallthru
      _
    %v20 = vld [vmem:[%s0] sm:$0x3]
    %v21 = vld [vmem:[%s1] sm:$0x3]
    %v22 = vld [vmem:[%s2] sm:$0x3]
    %v23 = vld [vmem:[%s3] sm:$0x3]
    %v24 = vmul.f32 %v22, %v21
    %vm25 = vcmask 254976
    %v26 = vsel %vm25, %v24, 0.0
    %27 = vadd.xlane.f32.xlu0 %v26
    %v28 = vpop.xlane.xlu0 %27
    %v29 = vmax.f32 %v28, 0.0
    %v30 = vand.u32 2147483647, %v28
    %v31 = vsub.f32 0.0, %v30
    %v32 = vmul.f32 %v31, 1.442695
    %v33 = vpow.pop %v32
    %v34 = vadd.f32 %v33, 1.0
    %v35 = vlog2.pop %v34
    %v36 = vmul.f32 %v35, 0.6931472
    %v37 = vmul.f32 -0.5, %v33
    %v38 = vadd.f32 %v37, 1.0
    %v39 = vmul.f32 %v38, %v33
    %v40 = vand.u32 2147483647, %v33
    %vm41 = vcmp.lt.f32.partialorder %v40, 0.0004427343
    %v42 = vsel %vm41, %v39, %v36
    %v43 = vadd.f32 %v29, %v42
    %v44 = vsub.f32 %v43, 1.0
    %v45 = vmul.f32 %v22, %v22
    %v46 = vsel %vm25, %v45, 0.0
    %47 = vadd.xlane.f32.xlu0 %v46
    %v48 = vpop.xlane.xlu0 %47
    %vm49 = vcmp.gt.f32.partialorder %v48, 0.0
    %v50 = vsel %vm49, %v48, 1.0
    %v51 = vsub.f32 %v44, %v28
    %v52 = vrcp.pop %v50
    %v53 = vmul.f32 %v51, %v52
    %v54 = vmul.f32 %v53, %v22
    %v55 = vadd.f32 %v21, %v54
    %v56 = vmul.f32 %v22, %v20
    %v57 = vsel %vm25, %v56, 0.0
    %58 = vadd.xlane.f32.xlu0 %v57
    %v59 = vpop.xlane.xlu0 %58
    %v60 = vadd.f32 %v59, %v23
    %v61 = vtanh.pop %v60
    %63 = vset.pattern.permute.xlu0 0
    %64 = vperm.xlu0 %63, %v61
    %v65 = vpop.permute.xlu0 %64
    %v67 = vmul.f32 %v55, %v65
    %v68 = vadd.f32 %v20, %v67
    %69 = vst.msk [vmem:[#allocation2] sm:$0x3] %vm25, %v68
    %v70 = vmul.f32 %v61, %v61
    %v71 = vsub.f32 1.0, %v70
    %v72 = vmul.f32 %v71, %v44
    %v73 = vadd.f32 %v72, 1.0
    %v74 = vlog2.pop %v73
    %v75 = vmul.f32 %v74, 0.6931472
    %vm76 = vcmask 1024
    %77 = vst.msk [vmem:[%s5] sm:$0x3] %vm76, %v75
    // Predicated region
    $region18: #{tpu_custom_call.1} parent=1 // pred_check
      _
    $region19: #{tpu_custom_call.1} parent=1 // pred_check_branch
      %79 = sbr.rel (0) target = $region21
    $region20: #{tpu_custom_call.1} parent=1 // pred_region
      %s81 = ssub.s32 32, 32
      %82 = vsyncadd [#allocation3], %s81
      %s84 = sshll.u32 [#allocation2], 4
      %s85 = int_to_ptr.vmem [resolvable:$true] %s84
      %87 = dma.vmem_to_hbm [thread:$0]  %s85, 32, %s4, [#allocation3]
    $region21: #{tpu_custom_call.1} parent=1 // pred_fallthru
      _
    // Predicated region
    $region22: #{tpu_custom_call.1} parent=1 // pred_check
      _
    $region23: #{tpu_custom_call.1} parent=1 // pred_check_branch
      %89 = sbr.rel (0) target = $region25
    $region24: #{tpu_custom_call.1} parent=1 // pred_region
      _
    $region25: #{tpu_custom_call.1} parent=1 // pred_fallthru
      _
    // Predicated region
    $region26: #{tpu_custom_call.1} parent=1 // pred_check
      _
    $region27: #{tpu_custom_call.1} parent=1 // pred_check_branch
      %91 = sbr.rel (0) target = $region29
    $region28: #{tpu_custom_call.1} parent=1 // pred_region
      %92 = dma.done [#allocation3], 32
    $region29: #{tpu_custom_call.1} parent=1 // pred_fallthru
      _
    // Predicated region
    $region30: #{tpu_custom_call.1} parent=1 // pred_check
      _
    $region31: #{tpu_custom_call.1} parent=1 // pred_check_branch
      %94 = sbr.rel (0) target = $region33
    $region32: #{tpu_custom_call.1} parent=1 // pred_region
      _
    $region33: #{tpu_custom_call.1} parent=1 // pred_fallthru
      _
    %95 = vsyncpa [#allocation3], 1

</llo_original>
